<compile_context>
chip_gen: v5e
topology: v5e:2x2
jax: 0.10.0
libtpu: 0.0.40
codegen_flags: <defaults>
</compile_context>

<pallas_src>
import functools

import jax
import jax.numpy as jnp
from jax import lax
from jax.experimental import pallas as pl
from jax.experimental.pallas import tpu as pltpu


_TARGET_BLOCK_BYTES = 4 * 1024 * 1024   # ~4 MiB of x per block (roofline sweet spot)
_VMEM_LIMIT_BYTES = 32 * 1024 * 1024    # fits all generations (v7x physical VMEM = 64 MiB)


def _round_up(x, m):
    return (x + m - 1) // m * m


def _fbn_kernel(scale_ref, bias_ref, x_ref, o_ref, *, tr):
    # scale/bias are full-extent (NC_pad, 1) columns resident in VMEM (fetched once);
    # slice out this row-block's rows and broadcast over the lane axis.
    r0 = pl.multiple_of(pl.program_id(0) * tr, tr)
    s = scale_ref[pl.ds(r0, tr), :]                       # (TR, 1) f32
    b = bias_ref[pl.ds(r0, tr), :]                        # (TR, 1) f32
    o_ref[...] = (x_ref[...].astype(jnp.float32) * s + b).astype(o_ref.dtype)


def frozen_batch_norm_2d(x, weight, bias, running_mean, running_var, eps=1e-5):
    """x: (N, C, H, W). Params: (C,). Returns (N, C, H, W), same dtype as x."""
    N, C, H, W = x.shape
    NC, HW = N * C, H * W
    itemsize = jnp.dtype(x.dtype).itemsize

    # Fold the four frozen buffers into two per-channel vectors outside the kernel
    # (trivial fused XLA op on (C,) data) -> halves param streams, removes per-tile rsqrt.
    scale_c = weight.astype(jnp.float32) * lax.rsqrt(running_var.astype(jnp.float32) + eps)
    bias_c = bias.astype(jnp.float32) - running_mean.astype(jnp.float32) * scale_c

    # ---- tile selection: this op is pure HBM bandwidth, so use big lane-dense blocks ----
    if HW % 128 == 0:
        tl_cap = max(128, (_TARGET_BLOCK_BYTES // (8 * itemsize)) // 128 * 128)
        TL = min(HW, tl_cap)                 # lane tile (multiple of 128)
    else:
        TL = HW                              # full spatial extent (block == full array dim)
    tr_cap = max(8, (_TARGET_BLOCK_BYTES // (TL * itemsize)) // 8 * 8)
    TR = min(_round_up(NC, 8), tr_cap)       # row tile (multiple of 8)

    grid = (pl.cdiv(NC, TR), pl.cdiv(HW, TL))
    NC_pad = grid[0] * TR

    # Per-row (= per (n, c), row r -> channel r % C) columns, padded to the row-grid
    # extent so the in-kernel dynamic slice never goes out of bounds on a partial block.
    def per_row(p):
        col = jnp.tile(p, (N,))                           # (NC,)
        if NC_pad != NC:
            col = jnp.pad(col, (0, NC_pad - NC))
        return col.reshape(NC_pad, 1)

    scale_r = per_row(scale_c)
    bias_r = per_row(bias_c)

    x2 = x.reshape(NC, HW)

    x_spec = pl.BlockSpec((TR, TL), lambda i, j: (i, j))
    # Full-extent param blocks + constant index map => DMA'd once, resident across steps.
    par_spec = pl.BlockSpec((NC_pad, 1), lambda i, j: (0, 0))

    out2 = pl.pallas_call(
        functools.partial(_fbn_kernel, tr=TR),
        out_shape=jax.ShapeDtypeStruct((NC, HW), x.dtype),
        grid_spec=pltpu.PrefetchScalarGridSpec(
            num_scalar_prefetch=0,
            grid=grid,
            in_specs=[par_spec, par_spec, x_spec],
            out_specs=x_spec,
        ),
        compiler_params=pltpu.CompilerParams(
            dimension_semantics=("parallel", "parallel"),
            vmem_limit_bytes=_VMEM_LIMIT_BYTES,
        ),
    )(scale_r, bias_r, x2)

    return out2.reshape(N, C, H, W)


# ---- BackboneBaseSegm.forward mask handling ---------------------------------------------
# TODO(synk): the backbone `body` is an arbitrary nn.Module and is not translated here; the
# nearest-neighbour mask resize below is a gather, done in plain XLA (no Pallas win for it).
def interpolate_mask_nearest(mask, out_hw):
    """Matches F.interpolate(m[None].float(), size=out_hw).to(torch.bool)[0] (mode='nearest')."""
    _, Hm, Wm = mask.shape
    oh, ow = out_hw
    rows = jnp.floor(jnp.arange(oh) * (Hm / oh)).astype(jnp.int32)
    cols = jnp.floor(jnp.arange(ow) * (Wm / ow)).astype(jnp.int32)
    return mask.astype(jnp.float32)[:, rows][:, :, cols].astype(jnp.bool_)


if __name__ == "__main__":
    key = jax.random.PRNGKey(0)
    k_x, k_w, k_b, k_m, k_v = jax.random.split(key, 5)

    N, C, H, W = 2, 4, 16, 16
    x = jax.random.normal(k_x, (N, C, H, W), dtype=jnp.float32)

    # Deterministic "frozen" buffers (module defaults are ones/zeros; perturb so the
    # test is non-trivial).
    weight = jnp.ones((C,), jnp.float32) + 0.1 * jax.random.normal(k_w, (C,), jnp.float32)
    bias = 0.1 * jax.random.normal(k_b, (C,), jnp.float32)
    running_mean = 0.1 * jax.random.normal(k_m, (C,), jnp.float32)
    running_var = jnp.ones((C,), jnp.float32) + 0.1 * jax.random.uniform(k_v, (C,), jnp.float32)

    out = frozen_batch_norm_2d(x, weight, bias, running_mean, running_var)
    out = jax.block_until_ready(out)

    # Pure-JAX reference (same math as the PyTorch forward).
    eps = 1e-5
    scale = (weight * (running_var + eps) ** -0.5).reshape(1, C, 1, 1)
    bias4 = bias.reshape(1, C, 1, 1) - running_mean.reshape(1, C, 1, 1) * scale
    ref = x * scale + bias4
    assert jnp.allclose(out, ref, atol=1e-5, rtol=1e-5)

    # BackboneBaseSegm.forward: resize the padding mask to the feature-map resolution.
    in_mask = jnp.zeros((N, H, W), jnp.bool_).at[:, : H // 2, : W // 2].set(True)
    feat_mask = interpolate_mask_nearest(in_mask, (H // 2, W // 2))
    feat_mask = jax.block_until_ready(feat_mask)
    assert feat_mask.shape == (N, H // 2, W // 2) and feat_mask.dtype == jnp.bool_

    print("KERNEL_OK")
</pallas_src>

<mosaic_0001>
module attributes {stable_mosaic.version = 11 : i64} {
  func.func @_fbn_kernel(%arg0: i32, %arg1: i32, %arg2: memref<8x1xf32, #tpu.memory_space<vmem>>, %arg3: memref<8x1xf32, #tpu.memory_space<vmem>>, %arg4: memref<8x256xf32, #tpu.memory_space<vmem>>, %arg5: memref<8x256xf32, #tpu.memory_space<vmem>>) attributes {dimension_semantics = [#tpu.dimension_semantics<parallel>, #tpu.dimension_semantics<parallel>], iteration_bounds = array<i64: 1, 1>, scalar_prefetch = 0 : i64, scratch_operands = 0 : i64, tpu.core_type = #tpu.core_type<tc>, window_params = [{pipeline_mode = #tpu.pipeline_mode<synchronous>, transform_indices = @transform_0, window_bounds = array<i64: 8, 1>}, {pipeline_mode = #tpu.pipeline_mode<synchronous>, transform_indices = @transform_1, window_bounds = array<i64: 8, 1>}, {transform_indices = @transform_2, window_bounds = array<i64: 8, 256>}, {transform_indices = @transform_3, window_bounds = array<i64: 8, 256>}]} {
    %c8_i32 = arith.constant 8 : i32
    %0 = arith.muli %arg0, %c8_i32 : i32
    %1 = tpu.assume_multiple %0, 8 : i32
    %2 = arith.index_cast %1 : i32 to index
    %c0 = arith.constant 0 : index
    %3 = vector.load %arg2[%2, %c0] : memref<8x1xf32, #tpu.memory_space<vmem>>, vector<8x1xf32>
    %4 = arith.index_cast %1 : i32 to index
    %c0_0 = arith.constant 0 : index
    %5 = vector.load %arg3[%4, %c0_0] : memref<8x1xf32, #tpu.memory_space<vmem>>, vector<8x1xf32>
    %c0_1 = arith.constant 0 : index
    %c0_2 = arith.constant 0 : index
    %6 = vector.load %arg4[%c0_1, %c0_2] : memref<8x256xf32, #tpu.memory_space<vmem>>, vector<8x256xf32>
    %7 = vector.broadcast %3 : vector<8x1xf32> to vector<8x256xf32>
    %8 = arith.mulf %6, %7 : vector<8x256xf32>
    %9 = vector.broadcast %5 : vector<8x1xf32> to vector<8x256xf32>
    %10 = arith.addf %8, %9 : vector<8x256xf32>
    %c0_3 = arith.constant 0 : index
    %c0_4 = arith.constant 0 : index
    %11 = vector.load %arg5[%c0_3, %c0_4] : memref<8x256xf32, #tpu.memory_space<vmem>>, vector<8x256xf32>
    tpu.vector_store %arg5[%c0_3, %c0_4], %10 {strides = array<i32>} : memref<8x256xf32, #tpu.memory_space<vmem>>, vector<8x256xf32>,
    return
  }
  func.func @transform_0(%arg0: i32, %arg1: i32) -> (i32, i32) {
    %c0_i32 = arith.constant 0 : i32
    %c0_i32_0 = arith.constant 0 : i32
    %c0_i32_1 = arith.constant 0 : i32
    return %c0_i32, %c0_i32_0 : i32, i32
  }
  func.func @transform_1(%arg0: i32, %arg1: i32) -> (i32, i32) {
    %c0_i32 = arith.constant 0 : i32
    %c0_i32_0 = arith.constant 0 : i32
    %c0_i32_1 = arith.constant 0 : i32
    return %c0_i32, %c0_i32_0 : i32, i32
  }
  func.func @transform_2(%arg0: i32, %arg1: i32) -> (i32, i32) {
    %c0_i32 = arith.constant 0 : i32
    return %arg0, %arg1 : i32, i32
  }
  func.func @transform_3(%arg0: i32, %arg1: i32) -> (i32, i32) {
    %c0_i32 = arith.constant 0 : i32
    return %arg0, %arg1 : i32, i32
  }
}

</mosaic_0001>

<llo_original>
// kernel: tpu_custom_call.1
$region0: #{tpu_custom_call.1}
  #allocation0 [shape = 'u32[]', space=smem, size = 0x4, offset = 0x4, fixed_abs, tag = 'smem constant byte address 0x4 - core index']
  #allocation1 [shape = 'u32[72,128]{1,0:T(1,128)}', space=vmem, size = 0x9000, scoped, tag = 'internal scratch']
  %s0 = inlined_call_operand.vmem [shape: f32[8,1], index: 0, kind: input, shape index: {}]
  %s1 = inlined_call_operand.vmem [shape: f32[8,1], index: 1, kind: input, shape index: {}]
  %s2 = inlined_call_operand.vmem [shape: f32[8,256], index: 2, kind: input, shape index: {}]
  %s3 = inlined_call_operand.hbm [shape: f32[8,256], index: 3, kind: output, shape index: {}]
  %s4 = sld [smem:[#allocation0]]
  $region22: #{tpu_custom_call.1} parent=0
    _
  %s6 = ssub.s32 1, %s4
  %s7 = scalar_select 0, %s6, %s4
  $region1: #{tpu_custom_call.1} parent=0
    #allocation2 [shape = 'u8[8192]{0}', space=vmem, size = 0x2000, scoped, tag = 'output window, operand 0, single buffered']
    #allocation3 [shape = 's32[1]{0}', space=sflag, size = 0x4, scoped, tag = 'scoped memory for tpu_custom_call.1']
    %8 = vsyncpa [#allocation3], 0
    // Predicated region
    $region2: #{tpu_custom_call.1} parent=1 // pred_check
      _
    $region3: #{tpu_custom_call.1} parent=1 // pred_check_branch
      %10 = sbr.rel (0) target = $region5
    $region4: #{tpu_custom_call.1} parent=1 // pred_region
      _
    $region5: #{tpu_custom_call.1} parent=1 // pred_fallthru
      _
    // Predicated region
    $region6: #{tpu_custom_call.1} parent=1 // pred_check
      _
    $region7: #{tpu_custom_call.1} parent=1 // pred_check_branch
      %12 = sbr.rel (0) target = $region9
    $region8: #{tpu_custom_call.1} parent=1 // pred_region
      _
    $region9: #{tpu_custom_call.1} parent=1 // pred_fallthru
      _
    // Predicated region
    $region10: #{tpu_custom_call.1} parent=1 // pred_check
      _
    $region11: #{tpu_custom_call.1} parent=1 // pred_check_branch
      %14 = sbr.rel (0) target = $region13
    $region12: #{tpu_custom_call.1} parent=1 // pred_region
      _
    $region13: #{tpu_custom_call.1} parent=1 // pred_fallthru
      _
    %s15 = smul.u32 0, 8
    %s16 = scalar_lea.vmem %s0, %s15
    %v17 = vld [vmem:[%s16] sm:$0xff]
    %s18 = scalar_lea.vmem %s1, %s15
    %v19 = vld [vmem:[%s18] sm:$0xff]
    %v20 = vld [vmem:[%s2] sm:$0xff]
    %v21 = vld [vmem:[%s2 + $0x8] sm:$0xff]
    %23 = vset.pattern.permute.xlu0 0
    %24 = vperm.xlu0 %23, %v17
    %v25 = vpop.permute.xlu0 %24
    %v27 = vmul.f32 %v20, %v25
    %v28 = vmul.f32 %v21, %v25
    %30 = vset.pattern.permute.xlu0 0
    %31 = vperm.xlu0 %30, %v19
    %v32 = vpop.permute.xlu0 %31
    %v34 = vadd.f32 %v27, %v32
    %v35 = vadd.f32 %v28, %v32
    %36 = vst [vmem:[#allocation2] sm:$0xff] %v34
    %37 = vst [vmem:[#allocation2 + $0x8] sm:$0xff] %v35
    // Predicated region
    $region14: #{tpu_custom_call.1} parent=1 // pred_check
      _
    $region15: #{tpu_custom_call.1} parent=1 // pred_check_branch
      %39 = sbr.rel (0) target = $region17
    $region16: #{tpu_custom_call.1} parent=1 // pred_region
      %41 = vsyncadd [#allocation3], 0
      %s43 = sshll.u32 [#allocation2], 4
      %s44 = int_to_ptr.vmem [resolvable:$true] %s43
      %s45 = sshll.u32 %s3, 4
      %s46 = int_to_ptr.hbm [resolvable:$true] %s45
      %48 = dma.vmem_to_hbm [thread:$0]  %s44, 256, %s46, [#allocation3]
    $region17: #{tpu_custom_call.1} parent=1 // pred_fallthru
      _
    // Predicated region
    $region18: #{tpu_custom_call.1} parent=1 // pred_check
      _
    $region19: #{tpu_custom_call.1} parent=1 // pred_check_branch
      %50 = sbr.rel (0) target = $region21
    $region20: #{tpu_custom_call.1} parent=1 // pred_region
      %52 = dma.done [#allocation3], 256
    $region21: #{tpu_custom_call.1} parent=1 // pred_fallthru
      _
    %53 = vsyncpa [#allocation3], 1

</llo_original>
